<compile_context>
chip_gen: v5e
topology: v5e:2x2
jax: 0.10.0
libtpu: 0.0.40
codegen_flags: <defaults>
</compile_context>

<pallas_src>
import jax
import jax.numpy as jnp
from jax.experimental import pallas as pl
from jax.experimental.pallas import tpu as pltpu

LENGTH = 64   # num_features (channels)
EPS = 1e-5


def _pick_hw_tile(hw, cap=1024):
    """Largest lane-dense (multiple-of-128) tile of the H*W axis, <= cap.

    If H*W is small or not a multiple of 128, fall back to the full extent
    (a full-dim block is always layout-legal)."""
    if hw <= cap or hw % 128 != 0:
        return hw
    t = cap  # cap is a multiple of 128
    while hw % t != 0:
        t -= 128
    return t


def _make_stats_kernel(inv_m, eps):
    """Phase 1: accumulate per-channel sum / sumsq; emit fused scale & shift."""

    def stats_kernel(x_ref, gamma_ref, beta_ref, scale_ref, shift_ref,
                     sum_sc, sq_sc):
        n_i = pl.program_id(0)
        t_i = pl.program_id(1)

        @pl.when((n_i == 0) & (t_i == 0))
        def _init():
            sum_sc[...] = jnp.zeros_like(sum_sc)
            sq_sc[...] = jnp.zeros_like(sq_sc)

        # x_ref block: (C, tHW)  — channels on sublanes, spatial on lanes.
        x = x_ref[...].astype(jnp.float32)
        # One sweep over the tile: sum and sum-of-squares together.
        sum_sc[...] += jnp.sum(x, axis=1, keepdims=True)        # (C, 1)
        sq_sc[...] += jnp.sum(x * x, axis=1, keepdims=True)     # (C, 1)

        last = (n_i == pl.num_programs(0) - 1) & (t_i == pl.num_programs(1) - 1)

        @pl.when(last)
        def _finalize():
            mean = sum_sc[...] * inv_m                           # (C, 1)
            var = sq_sc[...] * inv_m - mean * mean               # biased var
            inv_std = jax.lax.rsqrt(var + eps)
            scale = gamma_ref[...].astype(jnp.float32) * inv_std
            scale_ref[...] = scale
            shift_ref[...] = beta_ref[...].astype(jnp.float32) - mean * scale

    return stats_kernel


def _norm_kernel(x_ref, scale_ref, shift_ref, o_ref):
    """Phase 2: y = x * scale + shift (per-channel scale/shift broadcast)."""
    x = x_ref[...].astype(jnp.float32)                           # (C, tHW)
    y = x * scale_ref[...] + shift_ref[...]                      # (C,1) bcast
    o_ref[...] = y.astype(o_ref.dtype)


def batchnorm2d_pallas(x_nchw, gamma, beta, eps=EPS):
    """x_nchw: (N, C, H, W). gamma, beta: (C,). Returns NCHW output."""
    n, c, h, w = x_nchw.shape
    hw = h * w
    x3 = x_nchw.reshape(n, c, hw)                # contiguous view, no transpose
    thw = _pick_hw_tile(hw)
    n_tiles = hw // thw

    gamma2 = gamma.reshape(c, 1).astype(jnp.float32)
    beta2 = beta.reshape(c, 1).astype(jnp.float32)
    inv_m = 1.0 / float(n * hw)

    # ---- Phase 1: per-channel stats -> fused (scale, shift) -----------------
    scale, shift = pl.pallas_call(
        _make_stats_kernel(inv_m, eps),
        out_shape=(jax.ShapeDtypeStruct((c, 1), jnp.float32),
                   jax.ShapeDtypeStruct((c, 1), jnp.float32)),
        grid=(n, n_tiles),
        in_specs=[
            pl.BlockSpec((None, c, thw), lambda i, t: (i, 0, t)),
            pl.BlockSpec((c, 1), lambda i, t: (0, 0)),
            pl.BlockSpec((c, 1), lambda i, t: (0, 0)),
        ],
        out_specs=(pl.BlockSpec((c, 1), lambda i, t: (0, 0)),
                   pl.BlockSpec((c, 1), lambda i, t: (0, 0))),
        scratch_shapes=[pltpu.VMEM((c, 1), jnp.float32),
                        pltpu.VMEM((c, 1), jnp.float32)],
        compiler_params=pltpu.CompilerParams(
            dimension_semantics=("arbitrary", "arbitrary")),
    )(x3, gamma2, beta2)

    # ---- Phase 2: elementwise normalize (embarrassingly parallel) -----------
    out3 = pl.pallas_call(
        _norm_kernel,
        out_shape=jax.ShapeDtypeStruct((n, c, hw), x_nchw.dtype),
        grid=(n, n_tiles),
        in_specs=[
            pl.BlockSpec((None, c, thw), lambda i, t: (i, 0, t)),
            pl.BlockSpec((c, 1), lambda i, t: (0, 0)),
            pl.BlockSpec((c, 1), lambda i, t: (0, 0)),
        ],
        out_specs=pl.BlockSpec((None, c, thw), lambda i, t: (i, 0, t)),
        compiler_params=pltpu.CompilerParams(
            dimension_semantics=("parallel", "parallel")),
    )(x3, scale, shift)

    return out3.reshape(n, c, h, w)


def batchnorm2d_ref(x_nchw, gamma, beta, eps=EPS):
    mean = jnp.mean(x_nchw, axis=(0, 2, 3), keepdims=True)
    var = jnp.mean((x_nchw - mean) ** 2, axis=(0, 2, 3), keepdims=True)
    return (x_nchw - mean) * jax.lax.rsqrt(var + eps) \
        * gamma.reshape(1, -1, 1, 1) + beta.reshape(1, -1, 1, 1)


if __name__ == "__main__":
    key = jax.random.PRNGKey(0)
    N, C, H, W = 2, LENGTH, 16, 16          # H*W = 256 -> lane-dense tiles
    x = jax.random.normal(key, (N, C, H, W), dtype=jnp.float32)

    # PyTorch BatchNorm2d default init: weight=1, bias=0 (deterministic).
    gamma = jnp.ones((C,), dtype=jnp.float32)
    beta = jnp.zeros((C,), dtype=jnp.float32)

    out = jax.block_until_ready(batchnorm2d_pallas(x, gamma, beta))

    ref = batchnorm2d_ref(x, gamma, beta)
    assert out.shape == (N, C, H, W)
    assert jnp.max(jnp.abs(out - ref)) < 1e-4, "mismatch vs reference"

    print("KERNEL_OK")
</pallas_src>

<mosaic_0001>
module attributes {stable_mosaic.version = 11 : i64} {
  func.func @stats_kernel(%arg0: i32, %arg1: i32, %arg2: memref<1x64x256xf32, #tpu.memory_space<vmem>>, %arg3: memref<64x1xf32, #tpu.memory_space<vmem>>, %arg4: memref<64x1xf32, #tpu.memory_space<vmem>>, %arg5: memref<64x1xf32, #tpu.memory_space<vmem>>, %arg6: memref<64x1xf32, #tpu.memory_space<vmem>>, %arg7: memref<64x1xf32, #tpu.memory_space<vmem>>, %arg8: memref<64x1xf32, #tpu.memory_space<vmem>>) attributes {dimension_semantics = [#tpu.dimension_semantics<arbitrary>, #tpu.dimension_semantics<arbitrary>], iteration_bounds = array<i64: 2, 1>, scalar_prefetch = 0 : i64, scratch_operands = 2 : i64, tpu.core_type = #tpu.core_type<tc>, window_params = [{transform_indices = @transform_0, window_bounds = array<i64: 1, 64, 256>}, {pipeline_mode = #tpu.pipeline_mode<synchronous>, transform_indices = @transform_1, window_bounds = array<i64: 64, 1>}, {pipeline_mode = #tpu.pipeline_mode<synchronous>, transform_indices = @transform_2, window_bounds = array<i64: 64, 1>}, {pipeline_mode = #tpu.pipeline_mode<synchronous>, transform_indices = @transform_3, window_bounds = array<i64: 64, 1>}, {pipeline_mode = #tpu.pipeline_mode<synchronous>, transform_indices = @transform_4, window_bounds = array<i64: 64, 1>}]} {
    %c0_i32 = arith.constant 0 : i32
    %0 = arith.cmpi eq, %arg0, %c0_i32 : i32
    %c0_i32_0 = arith.constant 0 : i32
    %1 = arith.cmpi eq, %arg1, %c0_i32_0 : i32
    %2 = arith.andi %0, %1 : i1
    %3 = arith.extui %2 : i1 to i32
    %c0_i32_1 = arith.constant 0 : i32
    %4 = arith.cmpi ne, %3, %c0_i32_1 : i32
    scf.if %4 {
      %cst_15 = arith.constant 0.000000e+00 : f32
      %23 = vector.broadcast %cst_15 : f32 to vector<64x1xf32>
      %c0_16 = arith.constant 0 : index
      %c0_17 = arith.constant 0 : index
      %24 = vector.load %arg7[%c0_16, %c0_17] : memref<64x1xf32, #tpu.memory_space<vmem>>, vector<64x1xf32>
      tpu.vector_store %arg7[%c0_16, %c0_17], %23 {strides = array<i32>} : memref<64x1xf32, #tpu.memory_space<vmem>>, vector<64x1xf32>,
      %cst_18 = arith.constant 0.000000e+00 : f32
      %25 = vector.broadcast %cst_18 : f32 to vector<64x1xf32>
      %c0_19 = arith.constant 0 : index
      %c0_20 = arith.constant 0 : index
      %26 = vector.load %arg8[%c0_19, %c0_20] : memref<64x1xf32, #tpu.memory_space<vmem>>, vector<64x1xf32>
      tpu.vector_store %arg8[%c0_19, %c0_20], %25 {strides = array<i32>} : memref<64x1xf32, #tpu.memory_space<vmem>>, vector<64x1xf32>,
    } else {
    }
    %c0 = arith.constant 0 : index
    %c0_2 = arith.constant 0 : index
    %c0_3 = arith.constant 0 : index
    %5 = vector.load %arg2[%c0, %c0_2, %c0_3] : memref<1x64x256xf32, #tpu.memory_space<vmem>>, vector<1x64x256xf32>
    %6 = vector.shape_cast %5 : vector<1x64x256xf32> to vector<64x256xf32>
    %c0_4 = arith.constant 0 : index
    %c0_5 = arith.constant 0 : index
    %7 = vector.load %arg7[%c0_4, %c0_5] : memref<64x1xf32, #tpu.memory_space<vmem>>, vector<64x1xf32>
    %cst = arith.constant dense<0.000000e+00> : vector<64xf32>
    %8 = vector.multi_reduction <add>, %6, %cst [1] : vector<64x256xf32> to vector<64xf32>
    %9 = vector.shape_cast %8 : vector<64xf32> to vector<64x1xf32>
    %10 = arith.addf %7, %9 : vector<64x1xf32>
    %c0_6 = arith.constant 0 : index
    %c0_7 = arith.constant 0 : index
    %11 = vector.load %arg7[%c0_6, %c0_7] : memref<64x1xf32, #tpu.memory_space<vmem>>, vector<64x1xf32>
    tpu.vector_store %arg7[%c0_6, %c0_7], %10 {strides = array<i32>} : memref<64x1xf32, #tpu.memory_space<vmem>>, vector<64x1xf32>,
    %c0_8 = arith.constant 0 : index
    %c0_9 = arith.constant 0 : index
    %12 = vector.load %arg8[%c0_8, %c0_9] : memref<64x1xf32, #tpu.memory_space<vmem>>, vector<64x1xf32>
    %13 = arith.mulf %6, %6 : vector<64x256xf32>
    %cst_10 = arith.constant dense<0.000000e+00> : vector<64xf32>
    %14 = vector.multi_reduction <add>, %13, %cst_10 [1] : vector<64x256xf32> to vector<64xf32>
    %15 = vector.shape_cast %14 : vector<64xf32> to vector<64x1xf32>
    %16 = arith.addf %12, %15 : vector<64x1xf32>
    %c0_11 = arith.constant 0 : index
    %c0_12 = arith.constant 0 : index
    %17 = vector.load %arg8[%c0_11, %c0_12] : memref<64x1xf32, #tpu.memory_space<vmem>>, vector<64x1xf32>
    tpu.vector_store %arg8[%c0_11, %c0_12], %16 {strides = array<i32>} : memref<64x1xf32, #tpu.memory_space<vmem>>, vector<64x1xf32>,
    %c1_i32 = arith.constant 1 : i32
    %18 = arith.cmpi eq, %arg0, %c1_i32 : i32
    %c0_i32_13 = arith.constant 0 : i32
    %19 = arith.cmpi eq, %arg1, %c0_i32_13 : i32
    %20 = arith.andi %18, %19 : i1
    %21 = arith.extui %20 : i1 to i32
    %c0_i32_14 = arith.constant 0 : i32
    %22 = arith.cmpi ne, %21, %c0_i32_14 : i32
    scf.if %22 {
      %c0_15 = arith.constant 0 : index
      %c0_16 = arith.constant 0 : index
      %23 = vector.load %arg7[%c0_15, %c0_16] : memref<64x1xf32, #tpu.memory_space<vmem>>, vector<64x1xf32>
      %cst_17 = arith.constant 0.001953125 : f32
      %24 = vector.broadcast %cst_17 : f32 to vector<64x1xf32>
      %25 = arith.mulf %23, %24 : vector<64x1xf32>
      %c0_18 = arith.constant 0 : index
      %c0_19 = arith.constant 0 : index
      %26 = vector.load %arg8[%c0_18, %c0_19] : memref<64x1xf32, #tpu.memory_space<vmem>>, vector<64x1xf32>
      %cst_20 = arith.constant 0.001953125 : f32
      %27 = vector.broadcast %cst_20 : f32 to vector<64x1xf32>
      %28 = arith.mulf %26, %27 : vector<64x1xf32>
      %29 = arith.mulf %25, %25 : vector<64x1xf32>
      %30 = arith.subf %28, %29 : vector<64x1xf32>
      %cst_21 = arith.constant 9.99999974E-6 : f32
      %31 = vector.broadcast %cst_21 : f32 to vector<64x1xf32>
      %32 = arith.addf %30, %31 : vector<64x1xf32>
      %33 = math.rsqrt %32 : vector<64x1xf32>
      %c0_22 = arith.constant 0 : index
      %c0_23 = arith.constant 0 : index
      %34 = vector.load %arg3[%c0_22, %c0_23] : memref<64x1xf32, #tpu.memory_space<vmem>>, vector<64x1xf32>
      %35 = arith.mulf %34, %33 : vector<64x1xf32>
      %c0_24 = arith.constant 0 : index
      %c0_25 = arith.constant 0 : index
      %36 = vector.load %arg5[%c0_24, %c0_25] : memref<64x1xf32, #tpu.memory_space<vmem>>, vector<64x1xf32>
      tpu.vector_store %arg5[%c0_24, %c0_25], %35 {strides = array<i32>} : memref<64x1xf32, #tpu.memory_space<vmem>>, vector<64x1xf32>,
      %c0_26 = arith.constant 0 : index
      %c0_27 = arith.constant 0 : index
      %37 = vector.load %arg4[%c0_26, %c0_27] : memref<64x1xf32, #tpu.memory_space<vmem>>, vector<64x1xf32>
      %38 = arith.mulf %25, %35 : vector<64x1xf32>
      %39 = arith.subf %37, %38 : vector<64x1xf32>
      %c0_28 = arith.constant 0 : index
      %c0_29 = arith.constant 0 : index
      %40 = vector.load %arg6[%c0_28, %c0_29] : memref<64x1xf32, #tpu.memory_space<vmem>>, vector<64x1xf32>
      tpu.vector_store %arg6[%c0_28, %c0_29], %39 {strides = array<i32>} : memref<64x1xf32, #tpu.memory_space<vmem>>, vector<64x1xf32>,
    } else {
    }
    return
  }
  func.func @transform_0(%arg0: i32, %arg1: i32) -> (i32, i32, i32) {
    %c0_i32 = arith.constant 0 : i32
    %c0_i32_0 = arith.constant 0 : i32
    return %arg0, %c0_i32, %arg1 : i32, i32, i32
  }
  func.func @transform_1(%arg0: i32, %arg1: i32) -> (i32, i32) {
    %c0_i32 = arith.constant 0 : i32
    %c0_i32_0 = arith.constant 0 : i32
    %c0_i32_1 = arith.constant 0 : i32
    return %c0_i32, %c0_i32_0 : i32, i32
  }
  func.func @transform_2(%arg0: i32, %arg1: i32) -> (i32, i32) {
    %c0_i32 = arith.constant 0 : i32
    %c0_i32_0 = arith.constant 0 : i32
    %c0_i32_1 = arith.constant 0 : i32
    return %c0_i32, %c0_i32_0 : i32, i32
  }
  func.func @transform_3(%arg0: i32, %arg1: i32) -> (i32, i32) {
    %c0_i32 = arith.constant 0 : i32
    %c0_i32_0 = arith.constant 0 : i32
    %c0_i32_1 = arith.constant 0 : i32
    return %c0_i32, %c0_i32_0 : i32, i32
  }
  func.func @transform_4(%arg0: i32, %arg1: i32) -> (i32, i32) {
    %c0_i32 = arith.constant 0 : i32
    %c0_i32_0 = arith.constant 0 : i32
    %c0_i32_1 = arith.constant 0 : i32
    return %c0_i32, %c0_i32_0 : i32, i32
  }
}

</mosaic_0001>

<llo_original>
// kernel: tpu_custom_call.1
$region0: #{tpu_custom_call.1}
  #allocation0 [shape = 'u32[]', space=smem, size = 0x4, offset = 0x4, fixed_abs, tag = 'smem constant byte address 0x4 - core index']
  #allocation1 [shape = 'u32[72,128]{1,0:T(1,128)}', space=vmem, size = 0x9000, scoped, tag = 'internal scratch']
  #allocation2 [shape = 'f32[64,1]{1,0:T(8,128)}', space=vmem, size = 0x8000, scoped, tag = 'scratch operand']
  #allocation3 [shape = 'f32[64,1]{1,0:T(8,128)}', space=vmem, size = 0x8000, scoped, tag = 'scratch operand']
  %s0 = inlined_call_operand.hbm [shape: f32[2,64,256], index: 0, kind: input, shape index: {}]
  %s1 = inlined_call_operand.vmem [shape: f32[64,1], index: 1, kind: input, shape index: {}]
  %s2 = inlined_call_operand.vmem [shape: f32[64,1], index: 2, kind: input, shape index: {}]
  %s3 = inlined_call_operand.vmem [shape: f32[64,1], index: 3, kind: output, shape index: {0}]
  %s4 = inlined_call_operand.vmem [shape: f32[64,1], index: 4, kind: output, shape index: {1}]
  %5 = xla_tuple %s3, %s4
  %s6 = sld [smem:[#allocation0]]
  $region65: #{tpu_custom_call.1} parent=0
    _
  %s8 = ssub.s32 1, %s6
  %s9 = scalar_select 0, %s8, %s6
  $region1: #{tpu_custom_call.1} parent=0
    #allocation4 [shape = 'u8[131072]{0}', space=vmem, size = 0x20000, scoped, tag = 'input window, operand 0']
    #allocation5 [shape = 's32[2]{0}', space=sflag, size = 0x8, scoped, tag = 'scoped memory for tpu_custom_call.1']
    %10 = vsyncpa [#allocation5], 0
    %s11 = scalar_lea.sflag [#allocation5], 1
    %12 = vsyncpa %s11, 0
    loop: start=0, step=1, limit=4
    $region2: #{tpu_custom_call.1} parent=1 // loop_pre_header
      _
    $region3: #{tpu_custom_call.1} parent=1 // loop_header
      %s14 = sphi 0, %s18
      %p15 = scmp.ge.s32.totalorder %s14, 4
      %s21 = sphi 0, %s33
      %s22 = sphi 0, %s29
      %s23 = sphi 0, %s21
      %s24 = sphi 0, %s22
      %s25 = sphi 0, %s23
      %s26 = sphi 0, %s24
      %s38 = sphi 0, %s40
      %s41 = sphi 0, %s38
      %s42 = sphi 0, %s41
      %s58 = sphi 0, %s42
      %s62 = sphi 0, %s62
      %s64 = sphi 0, %s62
      %s65 = sphi 0, %s64
      %s79 = sphi 0, %s65
      %s83 = sphi 0, %s83
      %s85 = sphi 0, %s83
      %s86 = sphi 0, %s85
      %s100 = sphi 0, %s86
      %s104 = sphi 0, %s104
      %s106 = sphi 0, %s104
      %s107 = sphi 0, %s106
      %s121 = sphi 0, %s107
      %s125 = sphi 0, %s125
      %s127 = sphi 0, %s125
      %s128 = sphi 0, %s127
      %s142 = sphi 0, %s128
    $region4: #{tpu_custom_call.1} parent=1 // loop_header_branch
      %17 = sbr.rel (%p15) target = $region8
    $region5: #{tpu_custom_call.1} parent=1 // loop_body
      %s19 = ssub.s32 %s14, 1
      %s20 = ssub.s32 %s14, 2
      %s27 = sadd.s32 1, %s22
      %p28 = scmp.ge.s32.totalorder %s27, 1
      %s29 = scalar_select %p28, 0, %s27
      %s30 = sadd.s32 1, %s21
      %s31 = scalar_select %p28, %s30, %s21
      %p32 = scmp.ge.s32.totalorder %s31, 2
      %s33 = scalar_select %p32, 0, %s31
      %s34 = ssub.s32 %s21, %s33
      %s35 = ssub.s32 %s22, %s29
      %s36 = sor.u32 %s34, %s35
      %p37 = scmp.eq.s32.totalorder %s36, 0
      %s39 = sadd.s32 %s38, 1
      %s40 = scalar_select %p37, %s38, %s39
      %p43 = pneg %p37
      %p44 = scmp.eq.s32.totalorder %s14, 1
      %p45 = por %p43, %p44
      %p46 = scmp.ne.s32.totalorder %s38, %s41
      %p47 = scmp.eq.s32.totalorder %s14, 0
      %p48 = por %p46, %p47
      %p49 = scmp.ne.s32.totalorder %s38, %s41
      %p50 = scmp.eq.s32.totalorder %s19, 1
      %p51 = por %p49, %p50
      %p52 = scmp.ne.s32.totalorder %s41, %s42
      %p53 = scmp.eq.s32.totalorder %s19, 0
      %p54 = por %p52, %p53
      %p55 = scmp.ne.s32.totalorder %s41, %s42
      %p56 = scmp.eq.s32.totalorder %s20, 1
      %p57 = por %p55, %p56
      %p59 = scmp.ne.s32.totalorder %s42, %s58
      %p60 = scmp.eq.s32.totalorder %s20, 0
      %p61 = por %p59, %p60
      %s63 = sadd.s32 %s62, 1
      %p66 = scmp.eq.s32.totalorder %s14, 1
      %p67 = scmp.ne.s32.totalorder %s62, %s64
      %p68 = scmp.eq.s32.totalorder %s14, 0
      %p69 = por %p67, %p68
      %p70 = scmp.ne.s32.totalorder %s62, %s64
      %p71 = scmp.eq.s32.totalorder %s19, 1
      %p72 = por %p70, %p71
      %p73 = scmp.ne.s32.totalorder %s64, %s65
      %p74 = scmp.eq.s32.totalorder %s19, 0
      %p75 = por %p73, %p74
      %p76 = scmp.ne.s32.totalorder %s64, %s65
      %p77 = scmp.eq.s32.totalorder %s20, 1
      %p78 = por %p76, %p77
      %p80 = scmp.ne.s32.totalorder %s65, %s79
      %p81 = scmp.eq.s32.totalorder %s20, 0
      %p82 = por %p80, %p81
      %s84 = sadd.s32 %s83, 1
      %p87 = scmp.eq.s32.totalorder %s14, 1
      %p88 = scmp.ne.s32.totalorder %s83, %s85
      %p89 = scmp.eq.s32.totalorder %s14, 0
      %p90 = por %p88, %p89
      %p91 = scmp.ne.s32.totalorder %s83, %s85
      %p92 = scmp.eq.s32.totalorder %s19, 1
      %p93 = por %p91, %p92
      %p94 = scmp.ne.s32.totalorder %s85, %s86
      %p95 = scmp.eq.s32.totalorder %s19, 0
      %p96 = por %p94, %p95
      %p97 = scmp.ne.s32.totalorder %s85, %s86
      %p98 = scmp.eq.s32.totalorder %s20, 1
      %p99 = por %p97, %p98
      %p101 = scmp.ne.s32.totalorder %s86, %s100
      %p102 = scmp.eq.s32.totalorder %s20, 0
      %p103 = por %p101, %p102
      %s105 = sadd.s32 %s104, 1
      %p108 = scmp.eq.s32.totalorder %s14, 1
      %p109 = scmp.ne.s32.totalorder %s104, %s106
      %p110 = scmp.eq.s32.totalorder %s14, 0
      %p111 = por %p109, %p110
      %p112 = scmp.ne.s32.totalorder %s104, %s106
      %p113 = scmp.eq.s32.totalorder %s19, 1
      %p114 = por %p112, %p113
      %p115 = scmp.ne.s32.totalorder %s106, %s107
      %p116 = scmp.eq.s32.totalorder %s19, 0
      %p117 = por %p115, %p116
      %p118 = scmp.ne.s32.totalorder %s106, %s107
      %p119 = scmp.eq.s32.totalorder %s20, 1
      %p120 = por %p118, %p119
      %p122 = scmp.ne.s32.totalorder %s107, %s121
      %p123 = scmp.eq.s32.totalorder %s20, 0
      %p124 = por %p122, %p123
      %s126 = sadd.s32 %s125, 1
      %p129 = scmp.eq.s32.totalorder %s14, 1
      %p130 = scmp.ne.s32.totalorder %s125, %s127
      %p131 = scmp.eq.s32.totalorder %s14, 0
      %p132 = por %p130, %p131
      %p133 = scmp.ne.s32.totalorder %s125, %s127
      %p134 = scmp.eq.s32.totalorder %s19, 1
      %p135 = por %p133, %p134
      %p136 = scmp.ne.s32.totalorder %s127, %s128
      %p137 = scmp.eq.s32.totalorder %s19, 0
      %p138 = por %p136, %p137
      %p139 = scmp.ne.s32.totalorder %s127, %s128
      %p140 = scmp.eq.s32.totalorder %s20, 1
      %p141 = por %p139, %p140
      %p143 = scmp.ne.s32.totalorder %s128, %s142
      %p144 = scmp.eq.s32.totalorder %s20, 0
      %p145 = por %p143, %p144
      %p146 = scmp.le.s32.totalorder 1, %s14
      %p147 = scmp.lt.s32.totalorder %s14, 3
      %p148 = pnand %p146, %p147
      %p149 = pneg %p148
      // Predicated region
      $region9: #{tpu_custom_call.1} parent=5 // pred_check
        _
      $region10: #{tpu_custom_call.1} parent=5 // pred_check_branch
        %151 = sbr.rel (%p148) target = $region12
      $region11: #{tpu_custom_call.1} parent=5 // pred_region
        %s152 = ssub.s32 %s14, 1
        // Predicated region
        $region13: #{tpu_custom_call.1} parent=11 // pred_check
          %p153 = pneg %p75
        $region14: #{tpu_custom_call.1} parent=11 // pred_check_branch
          %155 = sbr.rel (%p153) target = $region16
        $region15: #{tpu_custom_call.1} parent=11 // pred_region
          _
        $region16: #{tpu_custom_call.1} parent=11 // pred_fallthru
          _
        // Predicated region
        $region17: #{tpu_custom_call.1} parent=11 // pred_check
          %p156 = pneg %p96
        $region18: #{tpu_custom_call.1} parent=11 // pred_check_branch
          %158 = sbr.rel (%p156) target = $region20
        $region19: #{tpu_custom_call.1} parent=11 // pred_region
          _
        $region20: #{tpu_custom_call.1} parent=11 // pred_fallthru
          _
      $region12: #{tpu_custom_call.1} parent=5 // pred_fallthru
        _
      %p159 = scmp.lt.s32.totalorder %s14, 2
      // Predicated region
      $region21: #{tpu_custom_call.1} parent=5 // pred_check
        %p160 = pneg %p159
      $region22: #{tpu_custom_call.1} parent=5 // pred_check_branch
        %162 = sbr.rel (%p160) target = $region24
      $region23: #{tpu_custom_call.1} parent=5 // pred_region
        // Predicated region
        $region25: #{tpu_custom_call.1} parent=23 // pred_check
          %p163 = pneg %p48
        $region26: #{tpu_custom_call.1} parent=23 // pred_check_branch
          %165 = sbr.rel (%p163) target = $region28
        $region27: #{tpu_custom_call.1} parent=23 // pred_region
          %s166 = sand.u32 %s38, 1
          %s167 = scalar_lea.sflag [#allocation5], %s166
          %s168 = sand.u32 %s38, 1
          %s169 = smul.addr %s168, 128
          %s170 = scalar_lea.vmem [#allocation4], %s169
          %s171 = smul.u32 2, %s22
          %173 = vsyncadd %s167, 0
          %s174 = smul.addr %s21, 16
          %s175 = sadd.s32 %s171, %s174
          %s176 = smul.addr %s175, 8
          %s177 = scalar_lea.hbm %s0, %s176
          %s178 = sshll.u32 %s177, 4
          %s179 = int_to_ptr.hbm [resolvable:$true] %s178
          %s180 = sshll.u32 %s170, 4
          %s181 = int_to_ptr.vmem [resolvable:$true] %s180
          %186 = dma.hbm_to_vmem [thread:$0]  %s179, 2048, %s181, %s167, 256, 256, 16
        $region28: #{tpu_custom_call.1} parent=23 // pred_fallthru
          _
      $region24: #{tpu_custom_call.1} parent=5 // pred_fallthru
        _
      %p187 = scmp.le.s32.totalorder 1, %s14
      %p188 = scmp.lt.s32.totalorder %s14, 3
      %p189 = pnand %p187, %p188
      %p190 = pneg %p189
      // Predicated region
      $region29: #{tpu_custom_call.1} parent=5 // pred_check
        _
      $region30: #{tpu_custom_call.1} parent=5 // pred_check_branch
        %192 = sbr.rel (%p189) target = $region32
      $region31: #{tpu_custom_call.1} parent=5 // pred_region
        %s193 = ssub.s32 %s14, 1
        %s194 = sand.u32 %s41, 1
        %s195 = scalar_lea.sflag [#allocation5], %s194
        %s196 = sand.u32 %s41, 1
        %s197 = smul.addr %s196, 128
        %s198 = scalar_lea.vmem [#allocation4], %s197
        // Predicated region
        $region33: #{tpu_custom_call.1} parent=31 // pred_check
          %p199 = pneg %p54
        $region34: #{tpu_custom_call.1} parent=31 // pred_check_branch
          %201 = sbr.rel (%p199) target = $region36
        $region35: #{tpu_custom_call.1} parent=31 // pred_region
          %203 = dma.done %s195, 2048
        $region36: #{tpu_custom_call.1} parent=31 // pred_fallthru
          _
        %s204 = sand.u32 %s41, 1
        %s205 = scalar_lea.sflag [#allocation5], %s204
        %s206 = sand.u32 %s41, 1
        %s207 = smul.addr %s206, 128
        %s208 = scalar_lea.vmem [#allocation4], %s207
        %p209 = pneg %p54
        %p210 = pneg %p51
        %p211 = pneg %p75
        %p212 = pneg %p72
        %p213 = pneg %p96
        %p214 = pneg %p93
        %p215 = pneg %p117
        %p216 = pneg %p114
        %p217 = pneg %p138
        %p218 = pneg %p135
        %s219 = smul.u32 2, %s24
        %p220 = scmp.eq.s32.totalorder %s23, 0
        %p221 = scmp.eq.s32.totalorder %s24, 0
        %p222 = pnand %p220, %p221
        %p223 = pneg %p222
        // Predicated region
        $region37: #{tpu_custom_call.1} parent=31 // pred_check
          _
        $region38: #{tpu_custom_call.1} parent=31 // pred_check_branch
          %225 = sbr.rel (%p222) target = $region40
        $region39: #{tpu_custom_call.1} parent=31 // pred_region
          %vm226 = vcmask 7168
          %227 = vst.msk [vmem:[#allocation2] sm:$0xff] %vm226, 0.0
          %228 = vst.msk [vmem:[#allocation2 + $0x8] sm:$0xff] %vm226, 0.0
          %229 = vst.msk [vmem:[#allocation2 + $0x10] sm:$0xff] %vm226, 0.0
          %230 = vst.msk [vmem:[#allocation2 + $0x18] sm:$0xff] %vm226, 0.0
          %231 = vst.msk [vmem:[#allocation2 + $0x20] sm:$0xff] %vm226, 0.0
          %232 = vst.msk [vmem:[#allocation2 + $0x28] sm:$0xff] %vm226, 0.0
          %233 = vst.msk [vmem:[#allocation2 + $0x30] sm:$0xff] %vm226, 0.0
          %234 = vst.msk [vmem:[#allocation2 + $0x38] sm:$0xff] %vm226, 0.0
          %235 = vst.msk [vmem:[#allocation3] sm:$0xff] %vm226, 0.0
          %236 = vst.msk [vmem:[#allocation3 + $0x8] sm:$0xff] %vm226, 0.0
          %237 = vst.msk [vmem:[#allocation3 + $0x10] sm:$0xff] %vm226, 0.0
          %238 = vst.msk [vmem:[#allocation3 + $0x18] sm:$0xff] %vm226, 0.0
          %239 = vst.msk [vmem:[#allocation3 + $0x20] sm:$0xff] %vm226, 0.0
          %240 = vst.msk [vmem:[#allocation3 + $0x28] sm:$0xff] %vm226, 0.0
          %241 = vst.msk [vmem:[#allocation3 + $0x30] sm:$0xff] %vm226, 0.0
          %242 = vst.msk [vmem:[#allocation3 + $0x38] sm:$0xff] %vm226, 0.0
        $region40: #{tpu_custom_call.1} parent=31 // pred_fallthru
          _
        %v243 = vld [vmem:[%s198] sm:$0xff]
        %v244 = vld [vmem:[%s198 + $0x8] sm:$0xff]
        %v245 = vld [vmem:[%s198 + $0x10] sm:$0xff]
        %v246 = vld [vmem:[%s198 + $0x18] sm:$0xff]
        %v247 = vld [vmem:[%s198 + $0x20] sm:$0xff]
        %v248 = vld [vmem:[%s198 + $0x28] sm:$0xff]
        %v249 = vld [vmem:[%s198 + $0x30] sm:$0xff]
        %v250 = vld [vmem:[%s198 + $0x38] sm:$0xff]
        %v251 = vld [vmem:[%s198 + $0x40] sm:$0xff]
        %v252 = vld [vmem:[%s198 + $0x48] sm:$0xff]
        %v253 = vld [vmem:[%s198 + $0x50] sm:$0xff]
        %v254 = vld [vmem:[%s198 + $0x58] sm:$0xff]
        %v255 = vld [vmem:[%s198 + $0x60] sm:$0xff]
        %v256 = vld [vmem:[%s198 + $0x68] sm:$0xff]
        %v257 = vld [vmem:[%s198 + $0x70] sm:$0xff]
        %v258 = vld [vmem:[%s198 + $0x78] sm:$0xff]
        %v259 = vld [vmem:[#allocation2] sm:$0xff]
        %v260 = vld [vmem:[#allocation2 + $0x8] sm:$0xff]
        %v261 = vld [vmem:[#allocation2 + $0x10] sm:$0xff]
        %v262 = vld [vmem:[#allocation2 + $0x18] sm:$0xff]
        %v263 = vld [vmem:[#allocation2 + $0x20] sm:$0xff]
        %v264 = vld [vmem:[#allocation2 + $0x28] sm:$0xff]
        %v265 = vld [vmem:[#allocation2 + $0x30] sm:$0xff]
        %v266 = vld [vmem:[#allocation2 + $0x38] sm:$0xff]
        %v267 = vadd.f32 %v243, %v244
        %268 = vadd.xlane.f32.xlu0 %v267
        %v269 = vpop.xlane.xlu0 %268
        %v270 = vadd.f32 %v245, %v246
        %271 = vadd.xlane.f32.xlu0 %v270
        %v272 = vpop.xlane.xlu0 %271
        %v273 = vadd.f32 %v247, %v248
        %274 = vadd.xlane.f32.xlu0 %v273
        %v275 = vpop.xlane.xlu0 %274
        %v276 = vadd.f32 %v249, %v250
        %277 = vadd.xlane.f32.xlu0 %v276
        %v278 = vpop.xlane.xlu0 %277
        %v279 = vadd.f32 %v251, %v252
        %280 = vadd.xlane.f32.xlu0 %v279
        %v281 = vpop.xlane.xlu0 %280
        %v282 = vadd.f32 %v253, %v254
        %283 = vadd.xlane.f32.xlu0 %v282
        %v284 = vpop.xlane.xlu0 %283
        %v285 = vadd.f32 %v255, %v256
        %286 = vadd.xlane.f32.xlu0 %v285
        %v287 = vpop.xlane.xlu0 %286
        %v288 = vadd.f32 %v257, %v258
        %289 = vadd.xlane.f32.xlu0 %v288
        %v290 = vpop.xlane.xlu0 %289
        %v291 = vadd.f32 %v259, %v269
        %v292 = vadd.f32 %v260, %v272
        %v293 = vadd.f32 %v261, %v275
        %v294 = vadd.f32 %v262, %v278
        %v295 = vadd.f32 %v263, %v281
        %v296 = vadd.f32 %v264, %v284
        %v297 = vadd.f32 %v265, %v287
        %v298 = vadd.f32 %v266, %v290
        %vm299 = vcmask 7168
        %300 = vst.msk [vmem:[#allocation2] sm:$0xff] %vm299, %v291
        %301 = vst.msk [vmem:[#allocation2 + $0x8] sm:$0xff] %vm299, %v292
        %302 = vst.msk [vmem:[#allocation2 + $0x10] sm:$0xff] %vm299, %v293
        %303 = vst.msk [vmem:[#allocation2 + $0x18] sm:$0xff] %vm299, %v294
        %304 = vst.msk [vmem:[#allocation2 + $0x20] sm:$0xff] %vm299, %v295
        %305 = vst.msk [vmem:[#allocation2 + $0x28] sm:$0xff] %vm299, %v296
        %306 = vst.msk [vmem:[#allocation2 + $0x30] sm:$0xff] %vm299, %v297
        %307 = vst.msk [vmem:[#allocation2 + $0x38] sm:$0xff] %vm299, %v298
        %v308 = vld [vmem:[#allocation3] sm:$0xff]
        %v309 = vld [vmem:[#allocation3 + $0x8] sm:$0xff]
        %v310 = vld [vmem:[#allocation3 + $0x10] sm:$0xff]
        %v311 = vld [vmem:[#allocation3 + $0x18] sm:$0xff]
        %v312 = vld [vmem:[#allocation3 + $0x20] sm:$0xff]
        %v313 = vld [vmem:[#allocation3 + $0x28] sm:$0xff]
        %v314 = vld [vmem:[#allocation3 + $0x30] sm:$0xff]
        %v315 = vld [vmem:[#allocation3 + $0x38] sm:$0xff]
        %v316 = vmul.f32 %v243, %v243
        %v317 = vmul.f32 %v244, %v244
        %v318 = vmul.f32 %v245, %v245
        %v319 = vmul.f32 %v246, %v246
        %v320 = vmul.f32 %v247, %v247
        %v321 = vmul.f32 %v248, %v248
        %v322 = vmul.f32 %v249, %v249
        %v323 = vmul.f32 %v250, %v250
        %v324 = vmul.f32 %v251, %v251
        %v325 = vmul.f32 %v252, %v252
        %v326 = vmul.f32 %v253, %v253
        %v327 = vmul.f32 %v254, %v254
        %v328 = vmul.f32 %v255, %v255
        %v329 = vmul.f32 %v256, %v256
        %v330 = vmul.f32 %v257, %v257
        %v331 = vmul.f32 %v258, %v258
        %v332 = vadd.f32 %v316, %v317
        %333 = vadd.xlane.f32.xlu0 %v332
        %v334 = vpop.xlane.xlu0 %333
        %v335 = vadd.f32 %v318, %v319
        %336 = vadd.xlane.f32.xlu0 %v335
        %v337 = vpop.xlane.xlu0 %336
        %v338 = vadd.f32 %v320, %v321
        %339 = vadd.xlane.f32.xlu0 %v338
        %v340 = vpop.xlane.xlu0 %339
        %v341 = vadd.f32 %v322, %v323
        %342 = vadd.xlane.f32.xlu0 %v341
        %v343 = vpop.xlane.xlu0 %342
        %v344 = vadd.f32 %v324, %v325
        %345 = vadd.xlane.f32.xlu0 %v344
        %v346 = vpop.xlane.xlu0 %345
        %v347 = vadd.f32 %v326, %v327
        %348 = vadd.xlane.f32.xlu0 %v347
        %v349 = vpop.xlane.xlu0 %348
        %v350 = vadd.f32 %v328, %v329
        %351 = vadd.xlane.f32.xlu0 %v350
        %v352 = vpop.xlane.xlu0 %351
        %v353 = vadd.f32 %v330, %v331
        %354 = vadd.xlane.f32.xlu0 %v353
        %v355 = vpop.xlane.xlu0 %354
        %v356 = vadd.f32 %v308, %v334
        %v357 = vadd.f32 %v309, %v337
        %v358 = vadd.f32 %v310, %v340
        %v359 = vadd.f32 %v311, %v343
        %v360 = vadd.f32 %v312, %v346
        %v361 = vadd.f32 %v313, %v349
        %v362 = vadd.f32 %v314, %v352
        %v363 = vadd.f32 %v315, %v355
        %364 = vst.msk [vmem:[#allocation3] sm:$0xff] %vm299, %v356
        %365 = vst.msk [vmem:[#allocation3 + $0x8] sm:$0xff] %vm299, %v357
        %366 = vst.msk [vmem:[#allocation3 + $0x10] sm:$0xff] %vm299, %v358
        %367 = vst.msk [vmem:[#allocation3 + $0x18] sm:$0xff] %vm299, %v359
        %368 = vst.msk [vmem:[#allocation3 + $0x20] sm:$0xff] %vm299, %v360
        %369 = vst.msk [vmem:[#allocation3 + $0x28] sm:$0xff] %vm299, %v361
        %370 = vst.msk [vmem:[#allocation3 + $0x30] sm:$0xff] %vm299, %v362
        %371 = vst.msk [vmem:[#allocation3 + $0x38] sm:$0xff] %vm299, %v363
        %p372 = scmp.eq.s32.totalorder %s23, 1
        %p373 = pnand %p372, %p221
        %p374 = pneg %p373
        // Predicated region
        $region41: #{tpu_custom_call.1} parent=31 // pred_check
          _
        $region42: #{tpu_custom_call.1} parent=31 // pred_check_branch
          %376 = sbr.rel (%p373) target = $region44
        $region43: #{tpu_custom_call.1} parent=31 // pred_region
          %v377 = vld [vmem:[#allocation2] sm:$0xff]
          %v378 = vld [vmem:[#allocation2 + $0x8] sm:$0xff]
          %v379 = vld [vmem:[#allocation2 + $0x10] sm:$0xff]
          %v380 = vld [vmem:[#allocation2 + $0x18] sm:$0xff]
          %v381 = vld [vmem:[#allocation2 + $0x20] sm:$0xff]
          %v382 = vld [vmem:[#allocation2 + $0x28] sm:$0xff]
          %v383 = vld [vmem:[#allocation2 + $0x30] sm:$0xff]
          %v384 = vld [vmem:[#allocation2 + $0x38] sm:$0xff]
          %v385 = vmul.f32 %v377, 0.001953125
          %v386 = vmul.f32 %v378, 0.001953125
          %v387 = vmul.f32 %v379, 0.001953125
          %v388 = vmul.f32 %v380, 0.001953125
          %v389 = vmul.f32 %v381, 0.001953125
          %v390 = vmul.f32 %v382, 0.001953125
          %v391 = vmul.f32 %v383, 0.001953125
          %v392 = vmul.f32 %v384, 0.001953125
          %v393 = vld [vmem:[#allocation3] sm:$0xff]
          %v394 = vld [vmem:[#allocation3 + $0x8] sm:$0xff]
          %v395 = vld [vmem:[#allocation3 + $0x10] sm:$0xff]
          %v396 = vld [vmem:[#allocation3 + $0x18] sm:$0xff]
          %v397 = vld [vmem:[#allocation3 + $0x20] sm:$0xff]
          %v398 = vld [vmem:[#allocation3 + $0x28] sm:$0xff]
          %v399 = vld [vmem:[#allocation3 + $0x30] sm:$0xff]
          %v400 = vld [vmem:[#allocation3 + $0x38] sm:$0xff]
          %v401 = vmul.f32 %v393, 0.001953125
          %v402 = vmul.f32 %v394, 0.001953125
          %v403 = vmul.f32 %v395, 0.001953125
          %v404 = vmul.f32 %v396, 0.001953125
          %v405 = vmul.f32 %v397, 0.001953125
          %v406 = vmul.f32 %v398, 0.001953125
          %v407 = vmul.f32 %v399, 0.001953125
          %v408 = vmul.f32 %v400, 0.001953125
          %v409 = vmul.f32 %v385, %v385
          %v410 = vmul.f32 %v386, %v386
          %v411 = vmul.f32 %v387, %v387
          %v412 = vmul.f32 %v388, %v388
          %v413 = vmul.f32 %v389, %v389
          %v414 = vmul.f32 %v390, %v390
          %v415 = vmul.f32 %v391, %v391
          %v416 = vmul.f32 %v392, %v392
          %v417 = vsub.f32 %v401, %v409
          %v418 = vsub.f32 %v402, %v410
          %v419 = vsub.f32 %v403, %v411
          %v420 = vsub.f32 %v404, %v412
          %v421 = vsub.f32 %v405, %v413
          %v422 = vsub.f32 %v406, %v414
          %v423 = vsub.f32 %v407, %v415
          %v424 = vsub.f32 %v408, %v416
          %v425 = vadd.f32 %v417, 1e-05
          %v426 = vadd.f32 %v418, 1e-05
          %v427 = vadd.f32 %v419, 1e-05
          %v428 = vadd.f32 %v420, 1e-05
          %v429 = vadd.f32 %v421, 1e-05
          %v430 = vadd.f32 %v422, 1e-05
          %v431 = vadd.f32 %v423, 1e-05
          %v432 = vadd.f32 %v424, 1e-05
          %v433 = vrsqrt.pop %v425
          %v434 = vmul.f32 %v433, %v425
          %v435 = vmul.f32 %v434, %v433
          %v436 = vmul.f32 0.5, %v435
          %v437 = vsub.f32 1.5, %v436
          %v438 = vmul.f32 %v433, %v437
          %vm439 = vweird.f32 %v425
          %vm440 = vweird.f32 %v433
          %vm441 = vmor %vm439, %vm440
          %v442 = vsel %vm441, %v433, %v438
          %v443 = vrsqrt.pop %v426
          %v444 = vmul.f32 %v443, %v426
          %v445 = vmul.f32 %v444, %v443
          %v446 = vmul.f32 0.5, %v445
          %v447 = vsub.f32 1.5, %v446
          %v448 = vmul.f32 %v443, %v447
          %vm449 = vweird.f32 %v426
          %vm450 = vweird.f32 %v443
          %vm451 = vmor %vm449, %vm450
          %v452 = vsel %vm451, %v443, %v448
          %v453 = vrsqrt.pop %v427
          %v454 = vmul.f32 %v453, %v427
          %v455 = vmul.f32 %v454, %v453
          %v456 = vmul.f32 0.5, %v455
          %v457 = vsub.f32 1.5, %v456
          %v458 = vmul.f32 %v453, %v457
          %vm459 = vweird.f32 %v427
          %vm460 = vweird.f32 %v453
          %vm461 = vmor %vm459, %vm460
          %v462 = vsel %vm461, %v453, %v458
          %v463 = vrsqrt.pop %v428
          %v464 = vmul.f32 %v463, %v428
          %v465 = vmul.f32 %v464, %v463
          %v466 = vmul.f32 0.5, %v465
          %v467 = vsub.f32 1.5, %v466
          %v468 = vmul.f32 %v463, %v467
          %vm469 = vweird.f32 %v428
          %vm470 = vweird.f32 %v463
          %vm471 = vmor %vm469, %vm470
          %v472 = vsel %vm471, %v463, %v468
          %v473 = vrsqrt.pop %v429
          %v474 = vmul.f32 %v473, %v429
          %v475 = vmul.f32 %v474, %v473
          %v476 = vmul.f32 0.5, %v475
          %v477 = vsub.f32 1.5, %v476
          %v478 = vmul.f32 %v473, %v477
          %vm479 = vweird.f32 %v429
          %vm480 = vweird.f32 %v473
          %vm481 = vmor %vm479, %vm480
          %v482 = vsel %vm481, %v473, %v478
          %v483 = vrsqrt.pop %v430
          %v484 = vmul.f32 %v483, %v430
          %v485 = vmul.f32 %v484, %v483
          %v486 = vmul.f32 0.5, %v485
          %v487 = vsub.f32 1.5, %v486
          %v488 = vmul.f32 %v483, %v487
          %vm489 = vweird.f32 %v430
          %vm490 = vweird.f32 %v483
          %vm491 = vmor %vm489, %vm490
          %v492 = vsel %vm491, %v483, %v488
          %v493 = vrsqrt.pop %v431
          %v494 = vmul.f32 %v493, %v431
          %v495 = vmul.f32 %v494, %v493
          %v496 = vmul.f32 0.5, %v495
          %v497 = vsub.f32 1.5, %v496
          %v498 = vmul.f32 %v493, %v497
          %vm499 = vweird.f32 %v431
          %vm500 = vweird.f32 %v493
          %vm501 = vmor %vm499, %vm500
          %v502 = vsel %vm501, %v493, %v498
          %v503 = vrsqrt.pop %v432
          %v504 = vmul.f32 %v503, %v432
          %v505 = vmul.f32 %v504, %v503
          %v506 = vmul.f32 0.5, %v505
          %v507 = vsub.f32 1.5, %v506
          %v508 = vmul.f32 %v503, %v507
          %vm509 = vweird.f32 %v432
          %vm510 = vweird.f32 %v503
          %vm511 = vmor %vm509, %vm510
          %v512 = vsel %vm511, %v503, %v508
          %v513 = vld [vmem:[%s1] sm:$0xff]
          %v514 = vld [vmem:[%s1 + $0x8] sm:$0xff]
          %v515 = vld [vmem:[%s1 + $0x10] sm:$0xff]
          %v516 = vld [vmem:[%s1 + $0x18] sm:$0xff]
          %v517 = vld [vmem:[%s1 + $0x20] sm:$0xff]
          %v518 = vld [vmem:[%s1 + $0x28] sm:$0xff]
          %v519 = vld [vmem:[%s1 + $0x30] sm:$0xff]
          %v520 = vld [vmem:[%s1 + $0x38] sm:$0xff]
          %v521 = vmul.f32 %v513, %v442
          %v522 = vmul.f32 %v514, %v452
          %v523 = vmul.f32 %v515, %v462
          %v524 = vmul.f32 %v516, %v472
          %v525 = vmul.f32 %v517, %v482
          %v526 = vmul.f32 %v518, %v492
          %v527 = vmul.f32 %v519, %v502
          %v528 = vmul.f32 %v520, %v512
          %529 = vst.msk [vmem:[%s3] sm:$0xff] %vm299, %v521
          %530 = vst.msk [vmem:[%s3 + $0x8] sm:$0xff] %vm299, %v522
          %531 = vst.msk [vmem:[%s3 + $0x10] sm:$0xff] %vm299, %v523
          %532 = vst.msk [vmem:[%s3 + $0x18] sm:$0xff] %vm299, %v524
          %533 = vst.msk [vmem:[%s3 + $0x20] sm:$0xff] %vm299, %v525
          %534 = vst.msk [vmem:[%s3 + $0x28] sm:$0xff] %vm299, %v526
          %535 = vst.msk [vmem:[%s3 + $0x30] sm:$0xff] %vm299, %v527
          %536 = vst.msk [vmem:[%s3 + $0x38] sm:$0xff] %vm299, %v528
          %v537 = vld [vmem:[%s2] sm:$0xff]
          %v538 = vld [vmem:[%s2 + $0x8] sm:$0xff]
          %v539 = vld [vmem:[%s2 + $0x10] sm:$0xff]
          %v540 = vld [vmem:[%s2 + $0x18] sm:$0xff]
          %v541 = vld [vmem:[%s2 + $0x20] sm:$0xff]
          %v542 = vld [vmem:[%s2 + $0x28] sm:$0xff]
          %v543 = vld [vmem:[%s2 + $0x30] sm:$0xff]
          %v544 = vld [vmem:[%s2 + $0x38] sm:$0xff]
          %v545 = vmul.f32 %v385, %v521
          %v546 = vmul.f32 %v386, %v522
          %v547 = vmul.f32 %v387, %v523
          %v548 = vmul.f32 %v388, %v524
          %v549 = vmul.f32 %v389, %v525
          %v550 = vmul.f32 %v390, %v526
          %v551 = vmul.f32 %v391, %v527
          %v552 = vmul.f32 %v392, %v528
          %v553 = vsub.f32 %v537, %v545
          %v554 = vsub.f32 %v538, %v546
          %v555 = vsub.f32 %v539, %v547
          %v556 = vsub.f32 %v540, %v548
          %v557 = vsub.f32 %v541, %v549
          %v558 = vsub.f32 %v542, %v550
          %v559 = vsub.f32 %v543, %v551
          %v560 = vsub.f32 %v544, %v552
          %561 = vst.msk [vmem:[%s4] sm:$0xff] %vm299, %v553
          %562 = vst.msk [vmem:[%s4 + $0x8] sm:$0xff] %vm299, %v554
          %563 = vst.msk [vmem:[%s4 + $0x10] sm:$0xff] %vm299, %v555
          %564 = vst.msk [vmem:[%s4 + $0x18] sm:$0xff] %vm299, %v556
          %565 = vst.msk [vmem:[%s4 + $0x20] sm:$0xff] %vm299, %v557
          %566 = vst.msk [vmem:[%s4 + $0x28] sm:$0xff] %vm299, %v558
          %567 = vst.msk [vmem:[%s4 + $0x30] sm:$0xff] %vm299, %v559
          %568 = vst.msk [vmem:[%s4 + $0x38] sm:$0xff] %vm299, %v560
        $region44: #{tpu_custom_call.1} parent=31 // pred_fallthru
          _
        // Predicated region
        $region45: #{tpu_custom_call.1} parent=31 // pred_check
          %p569 = pneg %p114
        $region46: #{tpu_custom_call.1} parent=31 // pred_check_branch
          %571 = sbr.rel (%p569) target = $region48
        $region47: #{tpu_custom_call.1} parent=31 // pred_region
          _
        $region48: #{tpu_custom_call.1} parent=31 // pred_fallthru
          _
        // Predicated region
        $region49: #{tpu_custom_call.1} parent=31 // pred_check
          %p572 = pneg %p135
        $region50: #{tpu_custom_call.1} parent=31 // pred_check_branch
          %574 = sbr.rel (%p572) target = $region52
        $region51: #{tpu_custom_call.1} parent=31 // pred_region
          _
        $region52: #{tpu_custom_call.1} parent=31 // pred_fallthru
          _
        // Predicated region
        $region53: #{tpu_custom_call.1} parent=31 // pred_check
          %p575 = pneg %p114
        $region54: #{tpu_custom_call.1} parent=31 // pred_check_branch
          %577 = sbr.rel (%p575) target = $region56
        $region55: #{tpu_custom_call.1} parent=31 // pred_region
          _
        $region56: #{tpu_custom_call.1} parent=31 // pred_fallthru
          _
        // Predicated region
        $region57: #{tpu_custom_call.1} parent=31 // pred_check
          %p578 = pneg %p135
        $region58: #{tpu_custom_call.1} parent=31 // pred_check_branch
          %580 = sbr.rel (%p578) target = $region60
        $region59: #{tpu_custom_call.1} parent=31 // pred_region
          _
        $region60: #{tpu_custom_call.1} parent=31 // pred_fallthru
          _
      $region32: #{tpu_custom_call.1} parent=5 // pred_fallthru
        _
      %p581 = scmp.le.s32.totalorder 2, %s14
      // Predicated region
      $region61: #{tpu_custom_call.1} parent=5 // pred_check
        %p582 = pneg %p581
      $region62: #{tpu_custom_call.1} parent=5 // pred_check_branch
        %584 = sbr.rel (%p582) target = $region64
      $region63: #{tpu_custom_call.1} parent=5 // pred_region
        %s585 = ssub.s32 %s14, 2
      $region64: #{tpu_custom_call.1} parent=5 // pred_fallthru
        _
    $region6: #{tpu_custom_call.1} parent=1 // loop_footer
      %s18 = sadd.s32 1, %s14
    $region7: #{tpu_custom_call.1} parent=1 // loop_footer_branch
      %13 = sbr.rel target = $region3
    $region8: #{tpu_custom_call.1} parent=1 // loop_exit
      _
    %586 = vsyncpa [#allocation5], 1
    %s587 = scalar_lea.sflag [#allocation5], 1
    %588 = vsyncpa %s587, 1

</llo_original>
